<compile_context>
chip_gen: v5e
topology: v5e:2x2
jax: 0.10.0
libtpu: 0.0.40
codegen_flags: <defaults>
</compile_context>

<pallas_src>
import functools

import jax
import jax.numpy as jnp
from jax.experimental import pallas as pl
from jax.experimental.pallas import tpu as pltpu


def _center_loss_kernel(feat_ref, cent_ref, out_ref, *, cos_dist):
    """Per-row CenterLoss term for one (block_rows, E_pad) tile.

    feat_ref : (block_rows, E_pad) raw features
    cent_ref : (block_rows, E_pad) centers already gathered per sample
    out_ref  : (block_rows, 1) per-row loss term (unreduced, unnormalized)
    """
    f = feat_ref[...].astype(jnp.float32)
    c = cent_ref[...].astype(jnp.float32)

    # F.normalize(x, p=2, dim=1, eps=1e-12) == x * rsqrt(max(||x||^2, eps^2))
    f_n = f * jax.lax.rsqrt(
        jnp.maximum(jnp.sum(f * f, axis=-1, keepdims=True), 1e-24))

    if cos_dist:
        # centers are normalized too; both operands unit-norm, so
        # CosineSimilarity reduces to a plain dot product.
        c_n = c * jax.lax.rsqrt(
            jnp.maximum(jnp.sum(c * c, axis=-1, keepdims=True), 1e-24))
        cos = jnp.sum(f_n * c_n, axis=-1, keepdims=True)     # (block_rows, 1)
        out_ref[...] = 1.0 - cos
    else:
        # nn.MSELoss numerator: per-row sum of (centers - f_n)^2
        d = c - f_n
        out_ref[...] = jnp.sum(d * d, axis=-1, keepdims=True)


def center_loss(features, labels, centers, *, cos_dist=True, block_rows=None):
    """CenterLoss forward.

    features: (B, E) float, labels: (B,) int, centers: (C, E) float.
    Returns a scalar float32 loss.
    """
    B, E = features.shape
    C, Ec = centers.shape
    assert Ec == E

    # ---- wrapper-side coalesced gather of the needed center rows -----------
    centers_batch = jnp.take(centers, labels.astype(jnp.int32), axis=0)  # (B, E)

    # ---- lane-dense layout: pad E to a multiple of 128 ----------------------
    # zero columns contribute 0 to both the norms and the squared differences.
    E_pad = ((E + 127) // 128) * 128
    if E_pad != E:
        features = jnp.pad(features, ((0, 0), (0, E_pad - E)))
        centers_batch = jnp.pad(centers_batch, ((0, 0), (0, E_pad - E)))

    # ---- row-tile sizing: biggest tile that keeps double-buffered inputs ---
    # comfortably under VMEM (2 inputs x 2 pipeline buffers per tile).
    itemsize = max(jnp.dtype(features.dtype).itemsize,
                   jnp.dtype(centers_batch.dtype).itemsize)
    vmem_budget = 24 * 1024 * 1024
    bytes_per_row = 2 * 2 * E_pad * itemsize
    if block_rows is None:
        block_rows = max(8, min(1024, (vmem_budget // bytes_per_row) // 8 * 8))
    block_rows = max(8, min(block_rows, ((B + 7) // 8) * 8))   # don't exceed batch

    num_tiles = -(-B // block_rows)
    Bp = num_tiles * block_rows
    if Bp != B:  # padded rows are dropped in the wrapper-side reduction
        features = jnp.pad(features, ((0, Bp - B), (0, 0)))
        centers_batch = jnp.pad(centers_batch, ((0, Bp - B), (0, 0)))

    kernel = functools.partial(_center_loss_kernel, cos_dist=cos_dist)

    per_row = pl.pallas_call(
        kernel,
        grid=(num_tiles,),
        in_specs=[
            pl.BlockSpec((block_rows, E_pad), lambda i: (i, 0)),   # features
            pl.BlockSpec((block_rows, E_pad), lambda i: (i, 0)),   # centers[labels]
        ],
        out_specs=pl.BlockSpec((block_rows, 1), lambda i: (i, 0)),
        out_shape=jax.ShapeDtypeStruct((Bp, 1), jnp.float32),
        compiler_params=pltpu.CompilerParams(
            # every tile writes its own output block -> shard across TCs (v7x)
            dimension_semantics=("parallel",),
            vmem_limit_bytes=48 * 1024 * 1024,
        ),
    )(features, centers_batch)

    # tail mask (padded rows) + final reduction + mean, all tiny wrapper ops
    total = jnp.sum(per_row[:B, 0])
    if cos_dist:
        return total / B
    return total / (B * E)


if __name__ == "__main__":
    num_classes = 16
    embed_size = 32
    batch = 8

    key = jax.random.PRNGKey(0)
    k_feat, k_cent, k_lab = jax.random.split(key, 3)

    # deterministic "parameter" init (nn.Parameter(torch.randn(C, E)))
    centers = jax.random.normal(k_cent, (num_classes, embed_size), jnp.float32)
    features = jax.random.normal(k_feat, (batch, embed_size), jnp.float32)
    labels = jax.random.randint(k_lab, (batch,), 0, num_classes, jnp.int32)

    loss_cos = center_loss(features, labels, centers, cos_dist=True)
    loss_mse = center_loss(features, labels, centers, cos_dist=False)
    jax.block_until_ready((loss_cos, loss_mse))

    # pure-JAX references (match the PyTorch forward exactly)
    f_n = features / jnp.maximum(
        jnp.linalg.norm(features, axis=1, keepdims=True), 1e-12)
    c_n = centers / jnp.maximum(
        jnp.linalg.norm(centers, axis=1, keepdims=True), 1e-12)
    cb_n = c_n[labels]
    cos = jnp.sum(f_n * cb_n, axis=1) / jnp.maximum(
        jnp.linalg.norm(f_n, axis=1) * jnp.linalg.norm(cb_n, axis=1), 1e-8)
    ref_cos = jnp.sum(1.0 - cos) / batch
    ref_mse = jnp.mean((centers[labels] - f_n) ** 2)

    assert jnp.allclose(loss_cos, ref_cos, atol=1e-5, rtol=1e-5), (loss_cos, ref_cos)
    assert jnp.allclose(loss_mse, ref_mse, atol=1e-5, rtol=1e-5), (loss_mse, ref_mse)

    print("KERNEL_OK")
</pallas_src>

<mosaic_0001>
module attributes {stable_mosaic.version = 11 : i64} {
  func.func @_center_loss_kernel(%arg0: i32, %arg1: memref<8x128xf32, #tpu.memory_space<vmem>>, %arg2: memref<8x128xf32, #tpu.memory_space<vmem>>, %arg3: memref<8x1xf32, #tpu.memory_space<vmem>>) attributes {dimension_semantics = [#tpu.dimension_semantics<parallel>], iteration_bounds = array<i64: 1>, scalar_prefetch = 0 : i64, scratch_operands = 0 : i64, tpu.core_type = #tpu.core_type<tc>, window_params = [{transform_indices = @transform_0, window_bounds = array<i64: 8, 128>}, {transform_indices = @transform_1, window_bounds = array<i64: 8, 128>}, {transform_indices = @transform_2, window_bounds = array<i64: 8, 1>}]} {
    %c0 = arith.constant 0 : index
    %c0_0 = arith.constant 0 : index
    %0 = vector.load %arg1[%c0, %c0_0] : memref<8x128xf32, #tpu.memory_space<vmem>>, vector<8x128xf32>
    %c0_1 = arith.constant 0 : index
    %c0_2 = arith.constant 0 : index
    %1 = vector.load %arg2[%c0_1, %c0_2] : memref<8x128xf32, #tpu.memory_space<vmem>>, vector<8x128xf32>
    %2 = arith.mulf %0, %0 : vector<8x128xf32>
    %cst = arith.constant dense<0.000000e+00> : vector<8xf32>
    %3 = vector.multi_reduction <add>, %2, %cst [1] : vector<8x128xf32> to vector<8xf32>
    %4 = vector.shape_cast %3 : vector<8xf32> to vector<8x1xf32>
    %cst_3 = arith.constant 1.000000e-24 : f32
    %5 = vector.broadcast %cst_3 : f32 to vector<8x1xf32>
    %6 = arith.maximumf %4, %5 : vector<8x1xf32>
    %7 = math.rsqrt %6 : vector<8x1xf32>
    %8 = vector.broadcast %7 : vector<8x1xf32> to vector<8x128xf32>
    %9 = arith.mulf %0, %8 : vector<8x128xf32>
    %10 = arith.mulf %1, %1 : vector<8x128xf32>
    %cst_4 = arith.constant dense<0.000000e+00> : vector<8xf32>
    %11 = vector.multi_reduction <add>, %10, %cst_4 [1] : vector<8x128xf32> to vector<8xf32>
    %12 = vector.shape_cast %11 : vector<8xf32> to vector<8x1xf32>
    %cst_5 = arith.constant 1.000000e-24 : f32
    %13 = vector.broadcast %cst_5 : f32 to vector<8x1xf32>
    %14 = arith.maximumf %12, %13 : vector<8x1xf32>
    %15 = math.rsqrt %14 : vector<8x1xf32>
    %16 = vector.broadcast %15 : vector<8x1xf32> to vector<8x128xf32>
    %17 = arith.mulf %1, %16 : vector<8x128xf32>
    %18 = arith.mulf %9, %17 : vector<8x128xf32>
    %cst_6 = arith.constant dense<0.000000e+00> : vector<8xf32>
    %19 = vector.multi_reduction <add>, %18, %cst_6 [1] : vector<8x128xf32> to vector<8xf32>
    %20 = vector.shape_cast %19 : vector<8xf32> to vector<8x1xf32>
    %cst_7 = arith.constant 1.000000e+00 : f32
    %21 = vector.broadcast %cst_7 : f32 to vector<8x1xf32>
    %22 = arith.subf %21, %20 : vector<8x1xf32>
    %c0_8 = arith.constant 0 : index
    %c0_9 = arith.constant 0 : index
    %23 = vector.load %arg3[%c0_8, %c0_9] : memref<8x1xf32, #tpu.memory_space<vmem>>, vector<8x1xf32>
    tpu.vector_store %arg3[%c0_8, %c0_9], %22 {strides = array<i32>} : memref<8x1xf32, #tpu.memory_space<vmem>>, vector<8x1xf32>,
    return
  }
  func.func @transform_0(%arg0: i32) -> (i32, i32) {
    %c0_i32 = arith.constant 0 : i32
    %c0_i32_0 = arith.constant 0 : i32
    return %arg0, %c0_i32 : i32, i32
  }
  func.func @transform_1(%arg0: i32) -> (i32, i32) {
    %c0_i32 = arith.constant 0 : i32
    %c0_i32_0 = arith.constant 0 : i32
    return %arg0, %c0_i32 : i32, i32
  }
  func.func @transform_2(%arg0: i32) -> (i32, i32) {
    %c0_i32 = arith.constant 0 : i32
    %c0_i32_0 = arith.constant 0 : i32
    return %arg0, %c0_i32 : i32, i32
  }
}

</mosaic_0001>

<llo_original>
// kernel: tpu_custom_call.1
$region0: #{tpu_custom_call.1}
  #allocation0 [shape = 'u32[]', space=smem, size = 0x4, offset = 0x4, fixed_abs, tag = 'smem constant byte address 0x4 - core index']
  #allocation1 [shape = 'u32[72,128]{1,0:T(1,128)}', space=vmem, size = 0x9000, scoped, tag = 'internal scratch']
  %s0 = inlined_call_operand.hbm [shape: f32[8,128], index: 0, kind: input, shape index: {}]
  %s1 = inlined_call_operand.hbm [shape: f32[8,128], index: 1, kind: input, shape index: {}]
  %s2 = inlined_call_operand.vmem [shape: f32[8,1], index: 2, kind: output, shape index: {}]
  %s3 = sld [smem:[#allocation0]]
  $region26: #{tpu_custom_call.1} parent=0
    _
  %s5 = ssub.s32 1, %s3
  %s6 = scalar_select 0, %s5, %s3
  $region1: #{tpu_custom_call.1} parent=0
    #allocation2 [shape = 'u8[4096]{0}', space=vmem, size = 0x1000, scoped, tag = 'input window, operand 0, single buffered']
    #allocation3 [shape = 's32[1]{0}', space=sflag, size = 0x4, scoped, tag = 'scoped memory for tpu_custom_call.1']
    #allocation4 [shape = 'u8[4096]{0}', space=vmem, size = 0x1000, scoped, tag = 'input window, operand 1, single buffered']
    #allocation5 [shape = 's32[1]{0}', space=sflag, size = 0x4, scoped, tag = 'scoped memory for tpu_custom_call.1']
    %7 = vsyncpa [#allocation3], 0
    %8 = vsyncpa [#allocation5], 0
    // Predicated region
    $region2: #{tpu_custom_call.1} parent=1 // pred_check
      _
    $region3: #{tpu_custom_call.1} parent=1 // pred_check_branch
      %10 = sbr.rel (0) target = $region5
    $region4: #{tpu_custom_call.1} parent=1 // pred_region
      %12 = vsyncadd [#allocation3], 0
      %s14 = sshll.u32 %s0, 4
      %s15 = int_to_ptr.hbm [resolvable:$true] %s14
      %s16 = sshll.u32 [#allocation2], 4
      %s17 = int_to_ptr.vmem [resolvable:$true] %s16
      %19 = dma.hbm_to_vmem [thread:$0]  %s15, 128, %s17, [#allocation3]
    $region5: #{tpu_custom_call.1} parent=1 // pred_fallthru
      _
    // Predicated region
    $region6: #{tpu_custom_call.1} parent=1 // pred_check
      _
    $region7: #{tpu_custom_call.1} parent=1 // pred_check_branch
      %21 = sbr.rel (0) target = $region9
    $region8: #{tpu_custom_call.1} parent=1 // pred_region
      %23 = vsyncadd [#allocation5], 0
      %s25 = sshll.u32 %s1, 4
      %s26 = int_to_ptr.hbm [resolvable:$true] %s25
      %s27 = sshll.u32 [#allocation4], 4
      %s28 = int_to_ptr.vmem [resolvable:$true] %s27
      %30 = dma.hbm_to_vmem [thread:$0]  %s26, 128, %s28, [#allocation5]
    $region9: #{tpu_custom_call.1} parent=1 // pred_fallthru
      _
    // Predicated region
    $region10: #{tpu_custom_call.1} parent=1 // pred_check
      _
    $region11: #{tpu_custom_call.1} parent=1 // pred_check_branch
      %32 = sbr.rel (0) target = $region13
    $region12: #{tpu_custom_call.1} parent=1 // pred_region
      %34 = dma.done [#allocation3], 128
    $region13: #{tpu_custom_call.1} parent=1 // pred_fallthru
      _
    // Predicated region
    $region14: #{tpu_custom_call.1} parent=1 // pred_check
      _
    $region15: #{tpu_custom_call.1} parent=1 // pred_check_branch
      %36 = sbr.rel (0) target = $region17
    $region16: #{tpu_custom_call.1} parent=1 // pred_region
      %38 = dma.done [#allocation5], 128
    $region17: #{tpu_custom_call.1} parent=1 // pred_fallthru
      _
    %v39 = vld [vmem:[#allocation2] sm:$0xff]
    %v40 = vld [vmem:[#allocation4] sm:$0xff]
    %v41 = vmul.f32 %v39, %v39
    %42 = vadd.xlane.f32.xlu0 %v41
    %v43 = vpop.xlane.xlu0 %42
    %v44 = vmax.f32 %v43, 1e-24
    %v45 = vrsqrt.pop %v44
    %v46 = vmul.f32 %v45, %v44
    %v47 = vmul.f32 %v46, %v45
    %v48 = vmul.f32 0.5, %v47
    %v49 = vsub.f32 1.5, %v48
    %v50 = vmul.f32 %v45, %v49
    %vm51 = vweird.f32 %v44
    %vm52 = vweird.f32 %v45
    %vm53 = vmor %vm51, %vm52
    %v54 = vsel %vm53, %v45, %v50
    %v55 = vmul.f32 %v39, %v54
    %v56 = vmul.f32 %v40, %v40
    %57 = vadd.xlane.f32.xlu0 %v56
    %v58 = vpop.xlane.xlu0 %57
    %v59 = vmax.f32 %v58, 1e-24
    %v60 = vrsqrt.pop %v59
    %v61 = vmul.f32 %v60, %v59
    %v62 = vmul.f32 %v61, %v60
    %v63 = vmul.f32 0.5, %v62
    %v64 = vsub.f32 1.5, %v63
    %v65 = vmul.f32 %v60, %v64
    %vm66 = vweird.f32 %v59
    %vm67 = vweird.f32 %v60
    %vm68 = vmor %vm66, %vm67
    %v69 = vsel %vm68, %v60, %v65
    %v70 = vmul.f32 %v40, %v69
    %v71 = vmul.f32 %v55, %v70
    %72 = vadd.xlane.f32.xlu0 %v71
    %v73 = vpop.xlane.xlu0 %72
    %v74 = vsub.f32 1.0, %v73
    %vm75 = vcmask 7168
    %76 = vst.msk [vmem:[%s2] sm:$0xff] %vm75, %v74
    // Predicated region
    $region18: #{tpu_custom_call.1} parent=1 // pred_check
      _
    $region19: #{tpu_custom_call.1} parent=1 // pred_check_branch
      %78 = sbr.rel (0) target = $region21
    $region20: #{tpu_custom_call.1} parent=1 // pred_region
      _
    $region21: #{tpu_custom_call.1} parent=1 // pred_fallthru
      _
    // Predicated region
    $region22: #{tpu_custom_call.1} parent=1 // pred_check
      _
    $region23: #{tpu_custom_call.1} parent=1 // pred_check_branch
      %80 = sbr.rel (0) target = $region25
    $region24: #{tpu_custom_call.1} parent=1 // pred_region
      _
    $region25: #{tpu_custom_call.1} parent=1 // pred_fallthru
      _
    %81 = vsyncpa [#allocation3], 1
    %82 = vsyncpa [#allocation5], 1

</llo_original>
